<compile_context>
chip_gen: v7x
topology: tpu7x:2x2x1
jax: 0.10.0
libtpu: 0.0.40
codegen_flags: <defaults>
</compile_context>

<pallas_src>
import jax
import jax.numpy as jnp
from jax.experimental import pallas as pl
from jax.experimental.pallas import tpu as pltpu

_LANE = 128      # vreg lane width
_SUBLANE = 8     # f32 sublane count


def _round_up(x, m):
    return ((x + m - 1) // m) * m


def embed_block_kernel(x_ref, w1_ref, b1_ref, w2_ref, b2_ref, o_ref):
    """One batch tile: y = hardswish(x @ W1 + b1) @ W2' + b2, where W2' already
    has the 1/6 hardswish scale folded in (done once at weight-prep time).

    Each output row depends only on its own input row, so partial final batch
    blocks (garbage rows beyond B) are safe: stores are masked per-row."""
    w_dtype = w1_ref.dtype

    # First linear on the MXU, f32 accumulation. x is already in the weight
    # dtype (cast once at the wrapper boundary), so this astype is a no-op.
    h = jnp.dot(x_ref[...].astype(w_dtype), w1_ref[...],
                preferred_element_type=jnp.float32)
    h = h + b1_ref[...]                      # b1 is kept in f32

    # Hardswish with the /6 folded into W2: g = h * relu6(h + 3)   (VPU, f32)
    g = h * jnp.clip(h + 3.0, 0.0, 6.0)

    # Second linear, f32 accumulation; output columns are the true embed_dim.
    y = jnp.dot(g.astype(w_dtype), w2_ref[...],
                preferred_element_type=jnp.float32)
    y = y + b2_ref[...]                      # b2 is kept in f32

    o_ref[...] = y.astype(o_ref.dtype)


def prepare_embed_block_params(w1, b1, w2, b2, weight_dtype=jnp.bfloat16):
    """One-time weight prep:
      * fold the hardswish 1/6 into W2,
      * zero-pad input_dim (K of matmul 1) and the hidden dim to lane multiples
        of 128 (zero rows/cols are numerically inert),
      * cast the weight MATRICES to weight_dtype (bf16 = fast MXU mode); keep
        biases in f32 (free, avoids needless precision loss).
    W1: (in_pad, emb_pad), W2: (emb_pad, embed_dim)  -- output stays unpadded.
    Biases: (1, emb_pad) and (1, embed_dim), f32."""
    input_dim, embed_dim = w1.shape
    in_p = _round_up(input_dim, _LANE)
    emb_p = _round_up(embed_dim, _LANE)

    w2f = w2 * (1.0 / 6.0)                   # fold hardswish /6 into W2

    w1p = jnp.pad(w1, ((0, in_p - input_dim), (0, emb_p - embed_dim)))
    w2p = jnp.pad(w2f, ((0, emb_p - embed_dim), (0, 0)))
    w1p = w1p.astype(weight_dtype)
    w2p = w2p.astype(weight_dtype)

    b1p = jnp.pad(b1.reshape(1, -1), ((0, 0), (0, emb_p - embed_dim))).astype(jnp.float32)
    b2p = b2.reshape(1, -1).astype(jnp.float32)
    return (w1p, b1p, w2p, b2p)


def _pick_batch_tile(B, block_b, row_align):
    """Largest useful batch tile, with >=2 grid steps when B is large enough so
    that the 'parallel' batch axis can be sharded across v7x's two cores."""
    if B <= row_align:
        return _round_up(B, _SUBLANE)
    if B <= block_b:
        if B >= 4 * row_align:               # enough rows for 2 worthwhile steps
            return _round_up(pl.cdiv(B, 2), row_align)
        return _round_up(B, row_align)
    return block_b


def embed_block(x, params, *, block_b=512):
    """x: (B, input_dim) -> (B, embed_dim, 1, 1), matching torch EmbedBlock."""
    w1, b1, w2, b2 = params
    B, input_dim = x.shape
    in_p, emb_p = w1.shape
    embed_dim = w2.shape[1]
    out_dtype = x.dtype

    # Cast x to the weight dtype once at the boundary (halves the x DMA stream)
    # and pad its feature dim to the padded K so the x tile is lane-dense.
    xp = x
    if jnp.dtype(w1.dtype).itemsize < jnp.dtype(x.dtype).itemsize:
        xp = xp.astype(w1.dtype)
    if in_p != input_dim:
        xp = jnp.pad(xp, ((0, 0), (0, in_p - input_dim)))

    row_align = 16 if xp.dtype == jnp.bfloat16 else _SUBLANE
    tb = _pick_batch_tile(B, block_b, row_align)
    grid = (pl.cdiv(B, tb),)

    def _bytes(a):
        return a.size * a.dtype.itemsize

    out_bytes = B * embed_dim * jnp.dtype(out_dtype).itemsize
    weight_bytes = _bytes(w1) + _bytes(b1) + _bytes(w2) + _bytes(b2)
    cost = pl.CostEstimate(
        flops=2 * B * in_p * emb_p + 2 * B * emb_p * embed_dim,
        transcendentals=0,
        bytes_accessed=_bytes(xp) + weight_bytes + out_bytes,
    )

    # VMEM budget: single-buffered resident weights (Buffered(1)) +
    # double-buffered x/out tiles (actual dtypes) + headroom, capped at ~90% of
    # physical VMEM (64 MiB on v7x, 128 MiB on v5e/v6e).
    x_tile_bytes = tb * in_p * jnp.dtype(xp.dtype).itemsize
    o_tile_bytes = tb * embed_dim * jnp.dtype(out_dtype).itemsize
    needed = weight_bytes + 2 * (x_tile_bytes + o_tile_bytes) + (4 << 20)
    try:
        phys_vmem = pltpu.get_tpu_info().vmem_capacity_bytes
    except Exception:
        phys_vmem = 64 << 20                  # conservative (v7x per-TC VMEM)
    vmem_limit = int(min(max(needed, 16 << 20), int(phys_vmem * 0.9)))

    resident = pl.Buffered(1)                 # constant blocks: one VMEM copy

    out2d = pl.pallas_call(
        embed_block_kernel,
        out_shape=jax.ShapeDtypeStruct((B, embed_dim), out_dtype),
        grid=grid,
        in_specs=[
            pl.BlockSpec((tb, in_p), lambda i: (i, 0)),       # batch-tiled input
            pl.BlockSpec(w1.shape, lambda i: (0, 0), pipeline_mode=resident),
            pl.BlockSpec(b1.shape, lambda i: (0, 0), pipeline_mode=resident),
            pl.BlockSpec(w2.shape, lambda i: (0, 0), pipeline_mode=resident),
            pl.BlockSpec(b2.shape, lambda i: (0, 0), pipeline_mode=resident),
        ],
        out_specs=pl.BlockSpec((tb, embed_dim), lambda i: (i, 0)),  # unpadded out
        compiler_params=pltpu.CompilerParams(
            dimension_semantics=("parallel",),                # megacore on v7x
            vmem_limit_bytes=vmem_limit,
        ),
        cost_estimate=cost,
    )(xp, w1, b1, w2, b2)

    # Unflatten(1, (embed_dim, 1, 1)) is a pure reshape; no extra compute pass.
    return out2d.reshape(B, embed_dim, 1, 1)


def _init_linear(key, fan_in, fan_out, dtype=jnp.float32):
    """Deterministic init mimicking torch.nn.Linear default U[-1/sqrt(fan_in), +]."""
    kw, kb = jax.random.split(key)
    bound = 1.0 / (fan_in ** 0.5)
    # Stored as (fan_in, fan_out) so the kernel computes x @ W.
    w = jax.random.uniform(kw, (fan_in, fan_out), dtype, -bound, bound)
    b = jax.random.uniform(kb, (1, fan_out), dtype, -bound, bound)
    return w, b


def reference_embed_block(x, w1, b1, w2, b2):
    """Pure-f32 torch-equivalent forward."""
    h = x @ w1 + b1
    h = h * jnp.clip(h + 3.0, 0.0, 6.0) / 6.0
    y = h @ w2 + b2
    return y.reshape(x.shape[0], -1, 1, 1)


def matched_reference(x, params, out_dtype):
    """Same math as the kernel (bf16 operands, f32 accumulation, folded 1/6),
    computed with plain XLA ops -- tight-tolerance correctness check."""
    w1p, b1p, w2p, b2p = params
    in_p = w1p.shape[0]
    xp = jnp.pad(x, ((0, 0), (0, in_p - x.shape[1]))).astype(w1p.dtype)
    h = jnp.dot(xp, w1p, preferred_element_type=jnp.float32) + b1p
    g = h * jnp.clip(h + 3.0, 0.0, 6.0)
    y = jnp.dot(g.astype(w2p.dtype), w2p, preferred_element_type=jnp.float32) + b2p
    return y.astype(out_dtype).reshape(x.shape[0], -1, 1, 1)


if __name__ == "__main__":
    input_dim = 16
    embed_dim = 32
    batch = 8

    key = jax.random.PRNGKey(0)
    kx, k1, k2 = jax.random.split(key, 3)

    x = jax.random.normal(kx, (batch, input_dim), jnp.float32)
    w1, b1 = _init_linear(k1, input_dim, embed_dim)
    w2, b2 = _init_linear(k2, embed_dim, embed_dim)

    # bf16 weight matrices (fast MXU mode on all generations), f32 biases,
    # K and hidden dims padded to 128 lanes, 1/6 folded into W2.
    params = prepare_embed_block_params(w1, b1, w2, b2, weight_dtype=jnp.bfloat16)

    out = jax.block_until_ready(embed_block(x, params))
    assert out.shape == (batch, embed_dim, 1, 1)

    # Tight check vs. the identical bf16/f32-accum math done with plain XLA ops.
    ref_match = matched_reference(x, params, out.dtype)
    assert jnp.allclose(out, ref_match, atol=1e-4, rtol=1e-4), (
        float(jnp.max(jnp.abs(out - ref_match))))

    # Loose semantic check vs. the full-f32 torch-equivalent forward
    # (difference comes only from bf16 weights -- expected precision change).
    ref_f32 = reference_embed_block(x, w1, b1, w2, b2)
    assert jnp.allclose(out, ref_f32, atol=1e-1, rtol=1e-1), (
        float(jnp.max(jnp.abs(out - ref_f32))))

    print("KERNEL_OK")
</pallas_src>

<mosaic_0001>
module attributes {stable_mosaic.version = 11 : i64} {
  func.func @embed_block_kernel(%arg0: i32, %arg1: memref<8x128xbf16, #tpu.memory_space<vmem>>, %arg2: memref<128x128xbf16, #tpu.memory_space<vmem>>, %arg3: memref<1x128xf32, #tpu.memory_space<vmem>>, %arg4: memref<128x32xbf16, #tpu.memory_space<vmem>>, %arg5: memref<1x32xf32, #tpu.memory_space<vmem>>, %arg6: memref<8x32xf32, #tpu.memory_space<vmem>>) attributes {dimension_semantics = [#tpu.dimension_semantics<parallel>], iteration_bounds = array<i64: 1>, scalar_prefetch = 0 : i64, scratch_operands = 0 : i64, tpu.core_type = #tpu.core_type<tc>, window_params = [{transform_indices = @transform_0, window_bounds = array<i64: 8, 128>}, {pipeline_mode = #tpu.pipeline_mode<synchronous>, transform_indices = @transform_1, window_bounds = array<i64: 128, 128>}, {pipeline_mode = #tpu.pipeline_mode<synchronous>, transform_indices = @transform_2, window_bounds = array<i64: 1, 128>}, {pipeline_mode = #tpu.pipeline_mode<synchronous>, transform_indices = @transform_3, window_bounds = array<i64: 128, 32>}, {pipeline_mode = #tpu.pipeline_mode<synchronous>, transform_indices = @transform_4, window_bounds = array<i64: 1, 32>}, {transform_indices = @transform_5, window_bounds = array<i64: 8, 32>}]} {
    %c0 = arith.constant 0 : index
    %c0_0 = arith.constant 0 : index
    %0 = vector.load %arg1[%c0, %c0_0] : memref<8x128xbf16, #tpu.memory_space<vmem>>, vector<8x128xbf16>
    %c0_1 = arith.constant 0 : index
    %c0_2 = arith.constant 0 : index
    %1 = vector.load %arg2[%c0_1, %c0_2] : memref<128x128xbf16, #tpu.memory_space<vmem>>, vector<128x128xbf16>
    %cst = arith.constant dense<0.000000e+00> : vector<8x128xf32>
    %2 = tpu.matmul %0, %1, %cst {dimension_numbers = #tpu.dot_dimension_numbers<[1], [0], [0], [1], [0, 0, 1, 1], [], []>} : vector<8x128xbf16>, vector<128x128xbf16>, vector<8x128xf32> -> vector<8x128xf32>
    %c0_3 = arith.constant 0 : index
    %c0_4 = arith.constant 0 : index
    %3 = vector.load %arg3[%c0_3, %c0_4] : memref<1x128xf32, #tpu.memory_space<vmem>>, vector<1x128xf32>
    %4 = vector.broadcast %3 : vector<1x128xf32> to vector<8x128xf32>
    %5 = arith.addf %2, %4 : vector<8x128xf32>
    %cst_5 = arith.constant 3.000000e+00 : f32
    %6 = vector.broadcast %cst_5 : f32 to vector<8x128xf32>
    %7 = arith.addf %5, %6 : vector<8x128xf32>
    %cst_6 = arith.constant 0.000000e+00 : f32
    %cst_7 = arith.constant 6.000000e+00 : f32
    %8 = vector.broadcast %cst_6 : f32 to vector<8x128xf32>
    %9 = arith.maximumf %8, %7 : vector<8x128xf32>
    %10 = vector.broadcast %cst_7 : f32 to vector<8x128xf32>
    %11 = arith.minimumf %10, %9 : vector<8x128xf32>
    %12 = arith.mulf %5, %11 : vector<8x128xf32>
    %13 = arith.truncf %12 : vector<8x128xf32> to vector<8x128xbf16>
    %c0_8 = arith.constant 0 : index
    %c0_9 = arith.constant 0 : index
    %14 = vector.load %arg4[%c0_8, %c0_9] : memref<128x32xbf16, #tpu.memory_space<vmem>>, vector<128x32xbf16>
    %cst_10 = arith.constant dense<0.000000e+00> : vector<8x32xf32>
    %15 = tpu.matmul %13, %14, %cst_10 {dimension_numbers = #tpu.dot_dimension_numbers<[1], [0], [0], [1], [0, 0, 1, 1], [], []>} : vector<8x128xbf16>, vector<128x32xbf16>, vector<8x32xf32> -> vector<8x32xf32>
    %c0_11 = arith.constant 0 : index
    %c0_12 = arith.constant 0 : index
    %16 = vector.load %arg5[%c0_11, %c0_12] : memref<1x32xf32, #tpu.memory_space<vmem>>, vector<1x32xf32>
    %17 = vector.broadcast %16 : vector<1x32xf32> to vector<8x32xf32>
    %18 = arith.addf %15, %17 : vector<8x32xf32>
    %c0_13 = arith.constant 0 : index
    %c0_14 = arith.constant 0 : index
    %19 = vector.load %arg6[%c0_13, %c0_14] : memref<8x32xf32, #tpu.memory_space<vmem>>, vector<8x32xf32>
    tpu.vector_store %arg6[%c0_13, %c0_14], %18 {strides = array<i32>} : memref<8x32xf32, #tpu.memory_space<vmem>>, vector<8x32xf32>,
    return
  }
  func.func @transform_0(%arg0: i32) -> (i32, i32) {
    %c0_i32 = arith.constant 0 : i32
    %c0_i32_0 = arith.constant 0 : i32
    return %arg0, %c0_i32 : i32, i32
  }
  func.func @transform_1(%arg0: i32) -> (i32, i32) {
    %c0_i32 = arith.constant 0 : i32
    %c0_i32_0 = arith.constant 0 : i32
    %c0_i32_1 = arith.constant 0 : i32
    return %c0_i32, %c0_i32_0 : i32, i32
  }
  func.func @transform_2(%arg0: i32) -> (i32, i32) {
    %c0_i32 = arith.constant 0 : i32
    %c0_i32_0 = arith.constant 0 : i32
    %c0_i32_1 = arith.constant 0 : i32
    return %c0_i32, %c0_i32_0 : i32, i32
  }
  func.func @transform_3(%arg0: i32) -> (i32, i32) {
    %c0_i32 = arith.constant 0 : i32
    %c0_i32_0 = arith.constant 0 : i32
    %c0_i32_1 = arith.constant 0 : i32
    return %c0_i32, %c0_i32_0 : i32, i32
  }
  func.func @transform_4(%arg0: i32) -> (i32, i32) {
    %c0_i32 = arith.constant 0 : i32
    %c0_i32_0 = arith.constant 0 : i32
    %c0_i32_1 = arith.constant 0 : i32
    return %c0_i32, %c0_i32_0 : i32, i32
  }
  func.func @transform_5(%arg0: i32) -> (i32, i32) {
    %c0_i32 = arith.constant 0 : i32
    %c0_i32_0 = arith.constant 0 : i32
    return %arg0, %c0_i32 : i32, i32
  }
}

</mosaic_0001>

<llo_original>
// kernel: tpu_custom_call.1
$region0: #{tpu_custom_call.1}
  #allocation0 [shape = 'u32[]', space=smem, size = 0x4, offset = 0x4, fixed_abs, tag = 'smem constant byte address 0x4 - core index']
  #allocation1 [shape = 'u32[144,128]{1,0:T(1,128)}', space=vmem, size = 0x12000, scoped, tag = 'internal scratch']
  %s0 = inlined_call_operand.vmem [shape: bf16[8,128], index: 0, kind: input, shape index: {}]
  %s1 = inlined_call_operand.vmem [shape: bf16[128,128], index: 1, kind: input, shape index: {}]
  %s2 = inlined_call_operand.vmem [shape: f32[1,128], index: 2, kind: input, shape index: {}]
  %s3 = inlined_call_operand.vmem [shape: bf16[128,32], index: 3, kind: input, shape index: {}]
  %s4 = inlined_call_operand.vmem [shape: f32[1,32], index: 4, kind: input, shape index: {}]
  %s5 = inlined_call_operand.hbm [shape: f32[8,32], index: 5, kind: output, shape index: {}]
  %s6 = sld [smem:[#allocation0]]
  $region30: #{tpu_custom_call.1} parent=0
    _
  %s8 = ssub.s32 1, %s6
  %s9 = scalar_select 0, %s8, %s6
  $region1: #{tpu_custom_call.1} parent=0
    #allocation2 [shape = 'u8[4096]{0}', space=vmem, size = 0x1000, scoped, tag = 'output window, operand 0, single buffered']
    #allocation3 [shape = 's32[1]{0}', space=sflag, size = 0x4, scoped, tag = 'scoped memory for tpu_custom_call.1']
    %10 = vsyncpa [#allocation3], 0
    // Predicated region
    $region2: #{tpu_custom_call.1} parent=1 // pred_check
      _
    $region3: #{tpu_custom_call.1} parent=1 // pred_check_branch
      %12 = sbr.rel (0) target = $region5
    $region4: #{tpu_custom_call.1} parent=1 // pred_region
      _
    $region5: #{tpu_custom_call.1} parent=1 // pred_fallthru
      _
    // Predicated region
    $region6: #{tpu_custom_call.1} parent=1 // pred_check
      _
    $region7: #{tpu_custom_call.1} parent=1 // pred_check_branch
      %14 = sbr.rel (0) target = $region9
    $region8: #{tpu_custom_call.1} parent=1 // pred_region
      _
    $region9: #{tpu_custom_call.1} parent=1 // pred_fallthru
      _
    // Predicated region
    $region10: #{tpu_custom_call.1} parent=1 // pred_check
      _
    $region11: #{tpu_custom_call.1} parent=1 // pred_check_branch
      %16 = sbr.rel (0) target = $region13
    $region12: #{tpu_custom_call.1} parent=1 // pred_region
      _
    $region13: #{tpu_custom_call.1} parent=1 // pred_fallthru
      _
    // Predicated region
    $region14: #{tpu_custom_call.1} parent=1 // pred_check
      _
    $region15: #{tpu_custom_call.1} parent=1 // pred_check_branch
      %18 = sbr.rel (0) target = $region17
    $region16: #{tpu_custom_call.1} parent=1 // pred_region
      _
    $region17: #{tpu_custom_call.1} parent=1 // pred_fallthru
      _
    // Predicated region
    $region18: #{tpu_custom_call.1} parent=1 // pred_check
      _
    $region19: #{tpu_custom_call.1} parent=1 // pred_check_branch
      %20 = sbr.rel (0) target = $region21
    $region20: #{tpu_custom_call.1} parent=1 // pred_region
      _
    $region21: #{tpu_custom_call.1} parent=1 // pred_fallthru
      _
    %v22 = vld [vmem:[%s0] sm:$0xf]
    %v23 = vld [vmem:[%s1] sm:$0xf]
    %v24 = vld [vmem:[%s1 + $0x4] sm:$0xf]
    %v25 = vld [vmem:[%s1 + $0x8] sm:$0xf]
    %v26 = vld [vmem:[%s1 + $0xc] sm:$0xf]
    %v27 = vld [vmem:[%s1 + $0x10] sm:$0xf]
    %v28 = vld [vmem:[%s1 + $0x14] sm:$0xf]
    %v29 = vld [vmem:[%s1 + $0x18] sm:$0xf]
    %v30 = vld [vmem:[%s1 + $0x1c] sm:$0xf]
    %v31 = vld [vmem:[%s1 + $0x20] sm:$0xf]
    %v32 = vld [vmem:[%s1 + $0x24] sm:$0xf]
    %v33 = vld [vmem:[%s1 + $0x28] sm:$0xf]
    %v34 = vld [vmem:[%s1 + $0x2c] sm:$0xf]
    %v35 = vld [vmem:[%s1 + $0x30] sm:$0xf]
    %v36 = vld [vmem:[%s1 + $0x34] sm:$0xf]
    %v37 = vld [vmem:[%s1 + $0x38] sm:$0xf]
    %v38 = vld [vmem:[%s1 + $0x3c] sm:$0xf]
    %v39 = vld [vmem:[%s2] sm:$0x1]
    %v41 = vlaneseq
    %v42 = vshrl.u32 %v41, 7
    %v43 = vsub.s32 0, %v42
    %v44 = vrot.slane %v39, %v43
    %v62 = vunpack.c.l.b16 %v23
    %v63 = vunpack.c.l.b16 %v24
    %v64 = vunpack.c.l.b16 %v25
    %v65 = vunpack.c.l.b16 %v26
    %v66 = vunpack.c.l.b16 %v27
    %v67 = vunpack.c.l.b16 %v28
    %v68 = vunpack.c.l.b16 %v29
    %v69 = vunpack.c.l.b16 %v30
    %v70 = vunpack.c.l.b16 %v31
    %v71 = vunpack.c.l.b16 %v32
    %v72 = vunpack.c.l.b16 %v33
    %v73 = vunpack.c.l.b16 %v34
    %v74 = vunpack.c.l.b16 %v35
    %v75 = vunpack.c.l.b16 %v36
    %v76 = vunpack.c.l.b16 %v37
    %v77 = vunpack.c.l.b16 %v38
    %v78 = vpack.c.b16 %v63, %v62
    %v79 = vpack.c.b16 %v65, %v64
    %v80 = vpack.c.b16 %v67, %v66
    %v81 = vpack.c.b16 %v69, %v68
    %v82 = vpack.c.b16 %v71, %v70
    %v83 = vpack.c.b16 %v73, %v72
    %v84 = vpack.c.b16 %v75, %v74
    %v85 = vpack.c.b16 %v77, %v76
    %94 = vmatprep.subr.bf16.mxu0 0
    %95 = vmatpush1.bf16.msra.mxu0 %v78
    %96 = vmatprep.subr.bf16.mxu0 0
    %97 = vmatpush1.bf16.msra.mxu0 %v79
    %98 = vmatprep.subr.bf16.mxu0 0
    %99 = vmatpush1.bf16.msra.mxu0 %v80
    %100 = vmatprep.subr.bf16.mxu0 0
    %101 = vmatpush1.bf16.msra.mxu0 %v81
    %102 = vmatprep.subr.bf16.mxu0 0
    %103 = vmatpush1.bf16.msra.mxu0 %v82
    %104 = vmatprep.subr.bf16.mxu0 0
    %105 = vmatpush1.bf16.msra.mxu0 %v83
    %106 = vmatprep.subr.bf16.mxu0 0
    %107 = vmatpush1.bf16.msra.mxu0 %v84
    %108 = vmatprep.subr.bf16.mxu0 0
    %109 = vmatpush1.bf16.msra.mxu0 %v85
    %110 = vmatprep.subr.bf16.mxu0 0
    %111 = vmatpush1.bf16.msra.mxu0 0
    %112 = vmatprep.subr.bf16.mxu0 0
    %113 = vmatpush1.bf16.msra.mxu0 0
    %114 = vmatprep.subr.bf16.mxu0 0
    %115 = vmatpush1.bf16.msra.mxu0 0
    %116 = vmatprep.subr.bf16.mxu0 0
    %117 = vmatpush1.bf16.msra.mxu0 0
    %118 = vmatprep.subr.bf16.mxu0 0
    %119 = vmatpush1.bf16.msra.mxu0 0
    %120 = vmatprep.subr.bf16.mxu0 0
    %121 = vmatpush1.bf16.msra.mxu0 0
    %122 = vmatprep.subr.bf16.mxu0 0
    %123 = vmatpush1.bf16.msra.mxu0 0
    %124 = vmatprep.subr.bf16.mxu0 0
    %125 = vmatpush1.bf16.msra.mxu0 0
    %126 = vmatprep.mubr.bf16.mxu0 0
    %127 = vmatmul.mubr.bf16.gmra.mrb[0].mxu0 %v22
    %v128 = vpop.f32.mrb[0].mxu0
    %v129 = vadd.f32 %v44, %v128
    %v130 = vpop.f32.mrb[0].mxu0
    %v131 = vpop.f32.mrb[0].mxu0
    %v132 = vpop.f32.mrb[0].mxu0
    %133 = vdwg.mxu0
    %v134 = vadd.f32 %v129, 3.0
    %v135 = vmax.f32 %v134, 0.0
    %v136 = vmin.f32 %v135, 6.0
    %v137 = vmul.f32 %v129, %v136
    %v138 = vpack.c.bf16 %v137, %v137
    %v139 = vld [vmem:[%s3] sm:$0xf]
    %v140 = vld [vmem:[%s3 + $0x4] sm:$0xf]
    %v141 = vld [vmem:[%s3 + $0x8] sm:$0xf]
    %v142 = vld [vmem:[%s3 + $0xc] sm:$0xf]
    %v143 = vld [vmem:[%s3 + $0x10] sm:$0xf]
    %v144 = vld [vmem:[%s3 + $0x14] sm:$0xf]
    %v145 = vld [vmem:[%s3 + $0x18] sm:$0xf]
    %v146 = vld [vmem:[%s3 + $0x1c] sm:$0xf]
    %v147 = vld [vmem:[%s3 + $0x20] sm:$0xf]
    %v148 = vld [vmem:[%s3 + $0x24] sm:$0xf]
    %v149 = vld [vmem:[%s3 + $0x28] sm:$0xf]
    %v150 = vld [vmem:[%s3 + $0x2c] sm:$0xf]
    %v151 = vld [vmem:[%s3 + $0x30] sm:$0xf]
    %v152 = vld [vmem:[%s3 + $0x34] sm:$0xf]
    %v153 = vld [vmem:[%s3 + $0x38] sm:$0xf]
    %v154 = vld [vmem:[%s3 + $0x3c] sm:$0xf]
    %v155 = vld [vmem:[%s4] sm:$0x1]
    %v157 = vlaneseq
    %v158 = vshrl.u32 %v157, 7
    %v159 = vsub.s32 0, %v158
    %v160 = vrot.slane %v155, %v159
    %v178 = vunpack.c.l.b16 %v139
    %v179 = vunpack.c.l.b16 %v140
    %v180 = vunpack.c.l.b16 %v141
    %v181 = vunpack.c.l.b16 %v142
    %v182 = vunpack.c.l.b16 %v143
    %v183 = vunpack.c.l.b16 %v144
    %v184 = vunpack.c.l.b16 %v145
    %v185 = vunpack.c.l.b16 %v146
    %v186 = vunpack.c.l.b16 %v147
    %v187 = vunpack.c.l.b16 %v148
    %v188 = vunpack.c.l.b16 %v149
    %v189 = vunpack.c.l.b16 %v150
    %v190 = vunpack.c.l.b16 %v151
    %v191 = vunpack.c.l.b16 %v152
    %v192 = vunpack.c.l.b16 %v153
    %v193 = vunpack.c.l.b16 %v154
    %v194 = vpack.c.b16 %v179, %v178
    %v195 = vpack.c.b16 %v181, %v180
    %v196 = vpack.c.b16 %v183, %v182
    %v197 = vpack.c.b16 %v185, %v184
    %v198 = vpack.c.b16 %v187, %v186
    %v199 = vpack.c.b16 %v189, %v188
    %v200 = vpack.c.b16 %v191, %v190
    %v201 = vpack.c.b16 %v193, %v192
    %210 = vmatprep.subr.bf16.mxu0 0
    %211 = vmatpush1.bf16.msra.mxu0 %v194
    %212 = vmatprep.subr.bf16.mxu0 0
    %213 = vmatpush1.bf16.msra.mxu0 %v195
    %214 = vmatprep.subr.bf16.mxu0 0
    %215 = vmatpush1.bf16.msra.mxu0 %v196
    %216 = vmatprep.subr.bf16.mxu0 0
    %217 = vmatpush1.bf16.msra.mxu0 %v197
    %218 = vmatprep.subr.bf16.mxu0 0
    %219 = vmatpush1.bf16.msra.mxu0 %v198
    %220 = vmatprep.subr.bf16.mxu0 0
    %221 = vmatpush1.bf16.msra.mxu0 %v199
    %222 = vmatprep.subr.bf16.mxu0 0
    %223 = vmatpush1.bf16.msra.mxu0 %v200
    %224 = vmatprep.subr.bf16.mxu0 0
    %225 = vmatpush1.bf16.msra.mxu0 %v201
    %226 = vmatprep.subr.bf16.mxu0 0
    %227 = vmatpush1.bf16.msra.mxu0 0
    %228 = vmatprep.subr.bf16.mxu0 0
    %229 = vmatpush1.bf16.msra.mxu0 0
    %230 = vmatprep.subr.bf16.mxu0 0
    %231 = vmatpush1.bf16.msra.mxu0 0
    %232 = vmatprep.subr.bf16.mxu0 0
    %233 = vmatpush1.bf16.msra.mxu0 0
    %234 = vmatprep.subr.bf16.mxu0 0
    %235 = vmatpush1.bf16.msra.mxu0 0
    %236 = vmatprep.subr.bf16.mxu0 0
    %237 = vmatpush1.bf16.msra.mxu0 0
    %238 = vmatprep.subr.bf16.mxu0 0
    %239 = vmatpush1.bf16.msra.mxu0 0
    %240 = vmatprep.subr.bf16.mxu0 0
    %241 = vmatpush1.bf16.msra.mxu0 0
    %242 = vmatprep.mubr.bf16.mxu0 0
    %243 = vmatmul.mubr.bf16.gmra.mrb[0].mxu0 %v138
    %v244 = vpop.f32.mrb[0].mxu0
    %v245 = vadd.f32 %v160, %v244
    %v246 = vpop.f32.mrb[0].mxu0
    %v247 = vpop.f32.mrb[0].mxu0
    %v248 = vpop.f32.mrb[0].mxu0
    %249 = vdwg.mxu0
    %vm250 = vcmask 261120
    %251 = vst.msk [vmem:[#allocation2] sm:$0xff] %vm250, %v245
    // Predicated region
    $region22: #{tpu_custom_call.1} parent=1 // pred_check
      _
    $region23: #{tpu_custom_call.1} parent=1 // pred_check_branch
      %253 = sbr.rel (0) target = $region25
    $region24: #{tpu_custom_call.1} parent=1 // pred_region
      %s255 = ssub.s32 128, 128
      %256 = vsyncadd [#allocation3], %s255
      %s258 = sshll.u32 [#allocation2], 4
      %s259 = int_to_ptr.vmem [resolvable:$true] %s258
      %261 = dma.vmem_to_hbm [thread:$0]  %s259, 128, %s5, [#allocation3]
    $region25: #{tpu_custom_call.1} parent=1 // pred_fallthru
      _
    // Predicated region
    $region26: #{tpu_custom_call.1} parent=1 // pred_check
      _
    $region27: #{tpu_custom_call.1} parent=1 // pred_check_branch
      %263 = sbr.rel (0) target = $region29
    $region28: #{tpu_custom_call.1} parent=1 // pred_region
      %264 = dma.done [#allocation3], 128
    $region29: #{tpu_custom_call.1} parent=1 // pred_fallthru
      _
    %265 = vsyncpa [#allocation3], 1

</llo_original>
